<compile_context>
chip_gen: v7x
topology: tpu7x:2x2x1
jax: 0.10.0
libtpu: 0.0.40
codegen_flags: <defaults>
</compile_context>

<pallas_src>
import jax
import jax.numpy as jnp
from jax.experimental import pallas as pl
from jax.experimental.pallas import tpu as pltpu


_VMEM_LIMIT_BYTES = 32 * 1024 * 1024  # safe scoped-VMEM limit on v5e/v6e/v7x


def _vmem_block_budget_bytes() -> int:
    """Budget for live (double-buffered) blocks, per TPU generation."""
    try:
        kind = jax.devices()[0].device_kind.lower()
    except Exception:
        return 12 * 1024 * 1024
    if "v6" in kind or "v7" in kind or "tpu7" in kind:
        # v6e: 32 MiB default scoped / 128 MiB physical; v7x: 32 / 64 MiB.
        return 20 * 1024 * 1024
    # v5e and unknown parts: keep tiles modest (16 MiB default scoped).
    return 12 * 1024 * 1024


def precompute_rope_tables(d_model: int, max_seq_len: int, theta: float = 10000.0):
    """Expanded (max_seq_len, d_model) tables:
       cos_full[s, 2i] = cos_full[s, 2i+1] = cos(angle[s, i])
       sin_signed[s, 2i] = -sin(angle[s, i]); sin_signed[s, 2i+1] = +sin(angle[s, i])
    """
    half = d_model // 2
    freqs = 1.0 / (theta ** (jnp.arange(0, d_model, 2)[:half].astype(jnp.float32) / d_model))
    t = jnp.arange(max_seq_len, dtype=jnp.float32)
    ang = jnp.outer(t, freqs)                                   # (max_seq_len, half)
    cos = jnp.cos(ang)
    sin = jnp.sin(ang)
    cos_full = jnp.repeat(cos, 2, axis=-1)                      # [c0,c0,c1,c1,...]
    sin_signed = jnp.stack([-sin, sin], axis=-1).reshape(max_seq_len, d_model)
    return cos_full, sin_signed


def _rope_kernel(x_ref, c_ref, s_ref, o_ref):
    # x_ref/o_ref: (rows, D) block in x.dtype; c_ref/s_ref: (rows, D) f32.
    x = x_ref[...].astype(jnp.float32)
    c = c_ref[...]
    s = s_ref[...]
    d = x.shape[-1]

    # Adjacent-lane swap: swap[2i] = x[2i+1], swap[2i+1] = x[2i].
    # Two XLU lane rolls + a lane-parity select (all on otherwise-idle units);
    # wrapped lanes are never selected because D is even.
    fwd = pltpu.roll(x, d - 1, 1)          # fwd[:, j] = x[:, (j + 1) % d]
    bwd = pltpu.roll(x, 1, 1)              # bwd[:, j] = x[:, (j - 1) % d]
    lane = jax.lax.broadcasted_iota(jnp.int32, (1, d), 1)
    x_swap = jnp.where((lane & 1) == 0, fwd, bwd)

    # out[2i]   = x[2i]*c_i + x[2i+1]*(-s_i)
    # out[2i+1] = x[2i+1]*c_i + x[2i]*(+s_i)
    o_ref[...] = (x * c + x_swap * s).astype(o_ref.dtype)


def rotary_positional_embedding(x, cos_full, sin_signed, start_pos=0,
                                max_block_rows=None):
    """x: (B, S, D); cos_full/sin_signed: (max_seq_len, D) f32. Returns rotated x.

    `max_block_rows` overrides the VMEM-derived row budget (testing/tuning)."""
    B, S, D = x.shape
    max_seq_len, d_tab = cos_full.shape
    if D % 2 != 0 or D < 2:
        raise ValueError(f"RoPE requires an even d_model >= 2, got {D}")
    if d_tab != D or sin_signed.shape != (max_seq_len, D):
        raise ValueError("freq tables do not match d_model")
    if not (0 <= start_pos and start_pos + S <= max_seq_len):
        raise ValueError(
            f"start_pos + seq_len = {start_pos + S} exceeds max_seq_len = {max_seq_len}")

    x_bytes = jnp.dtype(x.dtype).itemsize

    # start_pos is a static Python int -> static slice (no dynamic-slice copy op).
    c = cos_full[start_pos:start_pos + S]     # (S, D) f32
    s = sin_signed[start_pos:start_pos + S]   # (S, D) f32

    # ---- VMEM-budget-aware row tiling -------------------------------------
    # Live bytes per block row: double-buffered x in + out (x.dtype) and
    # double-buffered cos + sin (f32).
    per_row = D * (4 * x_bytes + 16)
    if max_block_rows is not None:
        row_budget = max(1, int(max_block_rows))
    else:
        row_budget = max(8, _vmem_block_budget_bytes() // per_row)

    cost = pl.CostEstimate(
        flops=3 * B * S * D,
        transcendentals=0,
        bytes_accessed=2 * B * S * D * x_bytes + 8 * S * D,
    )

    # ---- short-sequence path: fold batch elements into each block ---------
    seq_bytes = S * D * x_bytes
    fold = False
    tB = 1
    if S <= row_budget and seq_bytes < (1 << 20):
        # A single sequence is too small to amortize the ~0.35 us per-step
        # cost; pack several whole sequences per block.  Cap block size at
        # ~4 MiB of x (more buys nothing and only inflates the tiled tables).
        rows_cap = max(S, (4 << 20) // (D * x_bytes))
        tB = max(1, min(B, min(row_budget, rows_cap) // S))
        # Sublane legality: block rows must be a multiple of 8 or the full extent.
        while tB > 1 and tB * S != B * S and (tB * S) % 8 != 0:
            tB -= 1
        rows = tB * S
        fold = (rows == B * S) or (rows % 8 == 0)

    if fold:
        rows = tB * S
        x2 = x.reshape(B * S, D)                        # free (contiguous) view
        c_blk = jnp.tile(c, (tB, 1)) if tB > 1 else c   # (rows, D), DMA'd once
        s_blk = jnp.tile(s, (tB, 1)) if tB > 1 else s
        n_b = pl.cdiv(B, tB)
        out = pl.pallas_call(
            _rope_kernel,
            out_shape=jax.ShapeDtypeStruct((B * S, D), x.dtype),
            grid_spec=pltpu.PrefetchScalarGridSpec(
                num_scalar_prefetch=0,
                grid=(n_b,),
                in_specs=[
                    pl.BlockSpec((rows, D), lambda i: (i, 0)),   # x rows
                    pl.BlockSpec((rows, D), lambda i: (0, 0)),   # cos (constant)
                    pl.BlockSpec((rows, D), lambda i: (0, 0)),   # sin (constant)
                ],
                out_specs=pl.BlockSpec((rows, D), lambda i: (i, 0)),
            ),
            compiler_params=pltpu.CompilerParams(
                dimension_semantics=("parallel",),
                vmem_limit_bytes=_VMEM_LIMIT_BYTES),
            cost_estimate=cost,
        )(x2, c_blk, s_blk)
        return out.reshape(B, S, D)

    # ---- long-sequence path: tile the sequence dim, batch in the grid -----
    tS = min(S, row_budget)
    if tS < S:
        tS = max(8, (tS // 8) * 8)   # sublane-legal tile; tail handled by cdiv
    n_s = pl.cdiv(S, tS)
    return pl.pallas_call(
        _rope_kernel,
        out_shape=jax.ShapeDtypeStruct((B, S, D), x.dtype),
        grid_spec=pltpu.PrefetchScalarGridSpec(
            num_scalar_prefetch=0,
            # seq-tile outer, batch inner: cos/sin blocks are re-used across
            # the inner batch loop instead of being re-DMA'd every step.
            grid=(n_s, B),
            in_specs=[
                pl.BlockSpec((None, tS, D), lambda si, b: (b, si, 0)),  # x
                pl.BlockSpec((tS, D), lambda si, b: (si, 0)),           # cos
                pl.BlockSpec((tS, D), lambda si, b: (si, 0)),           # sin
            ],
            out_specs=pl.BlockSpec((None, tS, D), lambda si, b: (b, si, 0)),
        ),
        compiler_params=pltpu.CompilerParams(
            dimension_semantics=("parallel", "parallel"),
            vmem_limit_bytes=_VMEM_LIMIT_BYTES),
        cost_estimate=cost,
    )(x, c, s)


def _rope_reference(x, start_pos: int, theta: float = 10000.0):
    """Pure-JAX mirror of the PyTorch forward (complex multiply on pairs)."""
    B, S, D = x.shape
    freqs = 1.0 / (theta ** (jnp.arange(0, D, 2)[: D // 2].astype(jnp.float32) / D))
    t = jnp.arange(start_pos, start_pos + S, dtype=jnp.float32)
    ang = jnp.outer(t, freqs)                                   # (S, D//2)
    c, s = jnp.cos(ang), jnp.sin(ang)
    xr = x[..., 0::2].astype(jnp.float32)
    xi = x[..., 1::2].astype(jnp.float32)
    out_r = xr * c - xi * s
    out_i = xr * s + xi * c
    return jnp.stack([out_r, out_i], axis=-1).reshape(B, S, D).astype(x.dtype)


if __name__ == "__main__":
    d_model = 128        # realistic, lane-dense head dim
    max_seq_len = 32
    theta = 10000.0
    start_pos = 2

    # "Module parameters": the precomputed, pre-expanded freq tables.
    cos_full, sin_signed = precompute_rope_tables(d_model, max_seq_len, theta)
    key = jax.random.PRNGKey(0)

    # Case 1 (demo shape): short sequence -> batch-folded single-block path.
    B, S = 2, 8
    x = jax.random.normal(key, (B, S, d_model), dtype=jnp.float32)
    out = jax.block_until_ready(
        rotary_positional_embedding(x, cos_full, sin_signed, start_pos=start_pos))
    ref = _rope_reference(x, start_pos, theta)
    assert out.shape == x.shape and out.dtype == x.dtype
    assert jnp.allclose(out, ref, atol=1e-5, rtol=1e-5), float(jnp.max(jnp.abs(out - ref)))

    # Case 2: seq-tiled path with a partial tail block (forced tiny row budget).
    x2 = jax.random.normal(jax.random.PRNGKey(0), (2, 24, d_model), jnp.float32)
    out2 = jax.block_until_ready(
        rotary_positional_embedding(x2, cos_full, sin_signed, start_pos=start_pos,
                                    max_block_rows=16))
    ref2 = _rope_reference(x2, start_pos, theta)
    assert jnp.allclose(out2, ref2, atol=1e-5, rtol=1e-5)

    # Case 3: batch-folded path with a partial tail block over batch.
    x3 = jax.random.normal(jax.random.PRNGKey(0), (5, 8, d_model), jnp.float32)
    out3 = jax.block_until_ready(
        rotary_positional_embedding(x3, cos_full, sin_signed, start_pos=start_pos,
                                    max_block_rows=16))
    ref3 = _rope_reference(x3, start_pos, theta)
    assert jnp.allclose(out3, ref3, atol=1e-5, rtol=1e-5)

    print("KERNEL_OK")
</pallas_src>

<mosaic_0001>
module attributes {stable_mosaic.version = 11 : i64} {
  func.func @_rope_kernel(%arg0: i32, %arg1: memref<16x128xf32, #tpu.memory_space<vmem>>, %arg2: memref<16x128xf32, #tpu.memory_space<vmem>>, %arg3: memref<16x128xf32, #tpu.memory_space<vmem>>, %arg4: memref<16x128xf32, #tpu.memory_space<vmem>>) attributes {dimension_semantics = [#tpu.dimension_semantics<parallel>], iteration_bounds = array<i64: 1>, scalar_prefetch = 0 : i64, scratch_operands = 0 : i64, tpu.core_type = #tpu.core_type<tc>, window_params = [{transform_indices = @transform_0, window_bounds = array<i64: 16, 128>}, {pipeline_mode = #tpu.pipeline_mode<synchronous>, transform_indices = @transform_1, window_bounds = array<i64: 16, 128>}, {pipeline_mode = #tpu.pipeline_mode<synchronous>, transform_indices = @transform_2, window_bounds = array<i64: 16, 128>}, {transform_indices = @transform_3, window_bounds = array<i64: 16, 128>}]} {
    %c0 = arith.constant 0 : index
    %c0_0 = arith.constant 0 : index
    %0 = vector.load %arg1[%c0, %c0_0] : memref<16x128xf32, #tpu.memory_space<vmem>>, vector<16x128xf32>
    %c0_1 = arith.constant 0 : index
    %c0_2 = arith.constant 0 : index
    %1 = vector.load %arg2[%c0_1, %c0_2] : memref<16x128xf32, #tpu.memory_space<vmem>>, vector<16x128xf32>
    %c0_3 = arith.constant 0 : index
    %c0_4 = arith.constant 0 : index
    %2 = vector.load %arg3[%c0_3, %c0_4] : memref<16x128xf32, #tpu.memory_space<vmem>>, vector<16x128xf32>
    %c127_i32 = arith.constant 127 : i32
    %3 = tpu.dynamic_rotate %0 by %c127_i32 dim 1 : vector<16x128xf32>, i32 -> vector<16x128xf32>
    %c1_i32 = arith.constant 1 : i32
    %4 = tpu.dynamic_rotate %0 by %c1_i32 dim 1 : vector<16x128xf32>, i32 -> vector<16x128xf32>
    %5 = tpu.iota {dimensions = array<i32: 1>} : vector<1x128xi32>
    %c1_i32_5 = arith.constant 1 : i32
    %6 = vector.broadcast %c1_i32_5 : i32 to vector<1x128xi32>
    %7 = arith.andi %5, %6 : vector<1x128xi32>
    %c0_i32 = arith.constant 0 : i32
    %8 = vector.broadcast %c0_i32 : i32 to vector<1x128xi32>
    %9 = arith.cmpi eq, %7, %8 : vector<1x128xi32>
    %10 = vector.shape_cast %9 : vector<1x128xi1> to vector<1x128xi1>
    %11 = vector.broadcast %10 : vector<1x128xi1> to vector<16x128xi1>
    %12 = arith.select %11, %3, %4 : vector<16x128xi1>, vector<16x128xf32>
    %13 = arith.mulf %0, %1 : vector<16x128xf32>
    %14 = arith.mulf %12, %2 : vector<16x128xf32>
    %15 = arith.addf %13, %14 : vector<16x128xf32>
    %c0_6 = arith.constant 0 : index
    %c0_7 = arith.constant 0 : index
    %16 = vector.load %arg4[%c0_6, %c0_7] : memref<16x128xf32, #tpu.memory_space<vmem>>, vector<16x128xf32>
    tpu.vector_store %arg4[%c0_6, %c0_7], %15 {strides = array<i32>} : memref<16x128xf32, #tpu.memory_space<vmem>>, vector<16x128xf32>,
    return
  }
  func.func @transform_0(%arg0: i32) -> (i32, i32) {
    %c0_i32 = arith.constant 0 : i32
    %c0_i32_0 = arith.constant 0 : i32
    return %arg0, %c0_i32 : i32, i32
  }
  func.func @transform_1(%arg0: i32) -> (i32, i32) {
    %c0_i32 = arith.constant 0 : i32
    %c0_i32_0 = arith.constant 0 : i32
    %c0_i32_1 = arith.constant 0 : i32
    return %c0_i32, %c0_i32_0 : i32, i32
  }
  func.func @transform_2(%arg0: i32) -> (i32, i32) {
    %c0_i32 = arith.constant 0 : i32
    %c0_i32_0 = arith.constant 0 : i32
    %c0_i32_1 = arith.constant 0 : i32
    return %c0_i32, %c0_i32_0 : i32, i32
  }
  func.func @transform_3(%arg0: i32) -> (i32, i32) {
    %c0_i32 = arith.constant 0 : i32
    %c0_i32_0 = arith.constant 0 : i32
    return %arg0, %c0_i32 : i32, i32
  }
}

</mosaic_0001>

<llo_original>
// kernel: tpu_custom_call.1
$region0: #{tpu_custom_call.1}
  #allocation0 [shape = 'u32[]', space=smem, size = 0x4, offset = 0x4, fixed_abs, tag = 'smem constant byte address 0x4 - core index']
  #allocation1 [shape = 'u32[144,128]{1,0:T(1,128)}', space=vmem, size = 0x12000, scoped, tag = 'internal scratch']
  %s0 = inlined_call_operand.hbm [shape: f32[16,128], index: 0, kind: input, shape index: {}]
  %s1 = inlined_call_operand.hbm [shape: f32[16,128], index: 1, kind: input, shape index: {}]
  %s2 = inlined_call_operand.hbm [shape: f32[16,128], index: 2, kind: input, shape index: {}]
  %s3 = inlined_call_operand.hbm [shape: f32[16,128], index: 3, kind: output, shape index: {}]
  %s4 = sld [smem:[#allocation0]]
  $region34: #{tpu_custom_call.1} parent=0
    _
  %s6 = ssub.s32 1, %s4
  %s7 = scalar_select 0, %s6, %s4
  $region1: #{tpu_custom_call.1} parent=0
    #allocation2 [shape = 'u8[8192]{0}', space=vmem, size = 0x2000, scoped, tag = 'input window, operand 0, single buffered']
    #allocation3 [shape = 's32[1]{0}', space=sflag, size = 0x4, scoped, tag = 'scoped memory for tpu_custom_call.1']
    #allocation4 [shape = 's32[1]{0}', space=sflag, size = 0x4, scoped, tag = 'scoped memory for tpu_custom_call.1']
    #allocation5 [shape = 'u8[8192]{0}', space=vmem, size = 0x2000, scoped, tag = 'input window, operand 1, single buffered']
    #allocation6 [shape = 's32[1]{0}', space=sflag, size = 0x4, scoped, tag = 'scoped memory for tpu_custom_call.1']
    #allocation7 [shape = 'u8[8192]{0}', space=vmem, size = 0x2000, scoped, tag = 'input window, operand 2, single buffered']
    #allocation8 [shape = 'u8[8192]{0}', space=vmem, size = 0x2000, scoped, tag = 'output window, operand 0, single buffered']
    %8 = vsyncpa [#allocation3], 0
    %9 = vsyncpa [#allocation6], 0
    %10 = vsyncpa [#allocation4], 0
    // Predicated region
    $region2: #{tpu_custom_call.1} parent=1 // pred_check
      _
    $region3: #{tpu_custom_call.1} parent=1 // pred_check_branch
      %12 = sbr.rel (0) target = $region5
    $region4: #{tpu_custom_call.1} parent=1 // pred_region
      %s14 = ssub.s32 256, 256
      %15 = vsyncadd [#allocation3], %s14
      %s16 = sshll.u32 [#allocation2], 4
      %s17 = int_to_ptr.vmem [resolvable:$true] %s16
      %22 = dma.hbm_to_vmem [thread:$0]  %s0, 256, %s17, [#allocation3], 128, 128, 8
    $region5: #{tpu_custom_call.1} parent=1 // pred_fallthru
      _
    // Predicated region
    $region6: #{tpu_custom_call.1} parent=1 // pred_check
      _
    $region7: #{tpu_custom_call.1} parent=1 // pred_check_branch
      %24 = sbr.rel (0) target = $region9
    $region8: #{tpu_custom_call.1} parent=1 // pred_region
      %s26 = ssub.s32 256, 256
      %27 = vsyncadd [#allocation6], %s26
      %s28 = sshll.u32 [#allocation5], 4
      %s29 = int_to_ptr.vmem [resolvable:$true] %s28
      %34 = dma.hbm_to_vmem [thread:$0]  %s1, 256, %s29, [#allocation6], 128, 128, 8
    $region9: #{tpu_custom_call.1} parent=1 // pred_fallthru
      _
    // Predicated region
    $region10: #{tpu_custom_call.1} parent=1 // pred_check
      _
    $region11: #{tpu_custom_call.1} parent=1 // pred_check_branch
      %36 = sbr.rel (0) target = $region13
    $region12: #{tpu_custom_call.1} parent=1 // pred_region
      %s38 = ssub.s32 256, 256
      %39 = vsyncadd [#allocation6], %s38
      %s40 = sshll.u32 [#allocation7], 4
      %s41 = int_to_ptr.vmem [resolvable:$true] %s40
      %46 = dma.hbm_to_vmem [thread:$0]  %s2, 256, %s41, [#allocation6], 128, 128, 8
    $region13: #{tpu_custom_call.1} parent=1 // pred_fallthru
      _
    // Predicated region
    $region14: #{tpu_custom_call.1} parent=1 // pred_check
      _
    $region15: #{tpu_custom_call.1} parent=1 // pred_check_branch
      %48 = sbr.rel (0) target = $region17
    $region16: #{tpu_custom_call.1} parent=1 // pred_region
      %49 = dma.done [#allocation3], 256
    $region17: #{tpu_custom_call.1} parent=1 // pred_fallthru
      _
    // Predicated region
    $region18: #{tpu_custom_call.1} parent=1 // pred_check
      _
    $region19: #{tpu_custom_call.1} parent=1 // pred_check_branch
      %51 = sbr.rel (0) target = $region21
    $region20: #{tpu_custom_call.1} parent=1 // pred_region
      %52 = dma.done [#allocation6], 256
    $region21: #{tpu_custom_call.1} parent=1 // pred_fallthru
      _
    // Predicated region
    $region22: #{tpu_custom_call.1} parent=1 // pred_check
      _
    $region23: #{tpu_custom_call.1} parent=1 // pred_check_branch
      %54 = sbr.rel (0) target = $region25
    $region24: #{tpu_custom_call.1} parent=1 // pred_region
      %55 = dma.done [#allocation6], 256
    $region25: #{tpu_custom_call.1} parent=1 // pred_fallthru
      _
    %v56 = vld [vmem:[#allocation2] sm:$0xff]
    %v57 = vld [vmem:[#allocation2 + $0x8] sm:$0xff]
    %v58 = vld [vmem:[#allocation5] sm:$0xff]
    %v59 = vld [vmem:[#allocation5 + $0x8] sm:$0xff]
    %v60 = vld [vmem:[#allocation7] sm:$0xff]
    %v61 = vld [vmem:[#allocation7 + $0x8] sm:$0xff]
    %62 = vrot.lane.b32.xlu0 %v56, 127
    %v63 = vpop.permute.xlu0 %62
    %64 = vrot.lane.b32.xlu0 %v57, 127
    %v65 = vpop.permute.xlu0 %64
    %66 = vrot.lane.b32.xlu0 %v56, 1
    %v67 = vpop.permute.xlu0 %66
    %68 = vrot.lane.b32.xlu0 %v57, 1
    %v69 = vpop.permute.xlu0 %68
    %v70 = vlaneseq
    %v71 = vand.u32 %v70, 127
    %v72 = vand.u32 %v71, 1
    %vm73 = vcmp.eq.s32.totalorder %v72, 0
    %v74 = vsel %vm73, 1, 0
    %vm75 = vcmp.eq.s32.totalorder %v74, 1
    %v76 = vsel %vm75, %v63, %v67
    %v77 = vsel %vm75, %v65, %v69
    %v78 = vmul.f32 %v56, %v58
    %v79 = vmul.f32 %v57, %v59
    %v80 = vmul.f32 %v76, %v60
    %v81 = vmul.f32 %v77, %v61
    %v82 = vadd.f32 %v78, %v80
    %v83 = vadd.f32 %v79, %v81
    %84 = vst [vmem:[#allocation8] sm:$0xff] %v82
    %85 = vst [vmem:[#allocation8 + $0x8] sm:$0xff] %v83
    // Predicated region
    $region26: #{tpu_custom_call.1} parent=1 // pred_check
      _
    $region27: #{tpu_custom_call.1} parent=1 // pred_check_branch
      %87 = sbr.rel (0) target = $region29
    $region28: #{tpu_custom_call.1} parent=1 // pred_region
      %s89 = ssub.s32 256, 256
      %90 = vsyncadd [#allocation4], %s89
      %s91 = sshll.u32 [#allocation8], 4
      %s92 = int_to_ptr.vmem [resolvable:$true] %s91
      %97 = dma.vmem_to_hbm [thread:$0]  %s92, 256, %s3, [#allocation4], 128, 128, 8
    $region29: #{tpu_custom_call.1} parent=1 // pred_fallthru
      _
    // Predicated region
    $region30: #{tpu_custom_call.1} parent=1 // pred_check
      _
    $region31: #{tpu_custom_call.1} parent=1 // pred_check_branch
      %99 = sbr.rel (0) target = $region33
    $region32: #{tpu_custom_call.1} parent=1 // pred_region
      %100 = dma.done [#allocation4], 256
    $region33: #{tpu_custom_call.1} parent=1 // pred_fallthru
      _
    %101 = vsyncpa [#allocation3], 1
    %102 = vsyncpa [#allocation6], 1
    %103 = vsyncpa [#allocation4], 1

</llo_original>
